<compile_context>
chip_gen: v5e
topology: v5e:2x2
jax: 0.10.0
libtpu: 0.0.40
codegen_flags: <defaults>
</compile_context>

<pallas_src>
import functools

import jax
import jax.numpy as jnp
from jax.experimental import pallas as pl
from jax.experimental.pallas import tpu as pltpu


def _round_up(x, m):
    return (x + m - 1) // m * m


# ----------------------------- Pallas kernel --------------------------------


def kdmlp_kernel(
    xs_ref,     # (Tr, Cin_pad)   bf16: [x_flat | static_emb | zero pad]
    eps_ref,    # (Tr, H)         bf16: reparam noise in lanes [0,K) (rest unused)
    wbig_ref,   # (Cin_pad, H)    bf16: [[wts, 0], [0, I], [0, 0]]
    bbig_ref,   # (1, H)          f32 : [bts | 0]
    w1_ref,     # (NL, H, H)      bf16  fc1 weights (transposed, (C_in, C_out))
    b1_ref,     # (NL, 1, H)      f32
    w2_ref,     # (NL, H, H)      bf16  fc2 weights
    b2_ref,     # (NL, 1, H)      f32
    wr_ref,     # (H, 128)        bf16  regression weight, rows>=K / cols>=out_w zero
    br_ref,     # (1, 128)        f32
    out_ref,    # (Tr, H + 128)   bf16 out: [mu | std | pred | zero pad]
    *,
    num_layers: int,
    hidden: int,
    k: int,
):
    # time_series_emb_layer + concat([ts, node, TiD, DiW]) fused into a single
    # matmul via the block-structured weight (identity passes static channels).
    h = (jnp.dot(xs_ref[...], wbig_ref[...], preferred_element_type=jnp.float32)
         + bbig_ref[...])

    # encoder: residual MLP blocks (dropout == identity at inference)
    for layer in range(num_layers):
        hid = (jnp.dot(h.astype(jnp.bfloat16), w1_ref[layer],
                       preferred_element_type=jnp.float32) + b1_ref[layer])
        hid = jnp.maximum(hid, 0.0)                              # ReLU
        h = (jnp.dot(hid.astype(jnp.bfloat16), w2_ref[layer],
                     preferred_element_type=jnp.float32) + b2_ref[layer] + h)

    # Numerically-stable softplus over all lanes (EUP slot is cheap), then a
    # lane-select: low half keeps raw h (mu), high half keeps softplus (std).
    # One full-lane, unmasked bf16 store for the merged mu||std block.
    sp = jnp.maximum(h, 0.0) + jnp.log1p(jnp.exp(-jnp.abs(h)))
    col = jax.lax.broadcasted_iota(jnp.int32, (1, hidden), 1)    # (1,H), broadcast
    out_ref[:, :hidden] = jnp.where(col < k, h, sp).astype(out_ref.dtype)

    # reparametrize_n at full 128-lane width: roll std lanes under mu lanes
    # (hidden == 2*k so the roll direction is irrelevant).  Lanes >= k of z are
    # garbage but multiply zero rows of the padded regression weight.
    rolled = pltpu.roll(sp, shift=k, axis=1)
    z = h + eps_ref[...].astype(jnp.float32) * rolled

    # regression_layer: clean 128-contraction / 128-output-lane MXU matmul.
    pred = (jnp.dot(z.astype(jnp.bfloat16), wr_ref[...],
                    preferred_element_type=jnp.float32) + br_ref[...])
    out_ref[:, hidden:] = pred.astype(out_ref.dtype)


# ----------------------------- wrapper ---------------------------------------


def kdmlp_forward(feats, params, *, num_sample, eps_key, tile_rows=2048):
    """feats: (B, L, N, F) with F>=5; channels [0:3] data, [-2] TiD idx, [-1] DiW idx."""
    B, L, N, _ = feats.shape
    input_dim = 3

    X = feats[..., :input_dim]                                   # (B, L, N, 3)
    tid_idx = feats[:, -1, :, -2].astype(jnp.int32)              # (B, N)
    diw_idx = feats[:, -1, :, -1].astype(jnp.int32)              # (B, N)

    tid_emb = params["time_in_day_emb"][tid_idx]                 # (B, N, tid)
    diw_emb = params["day_in_week_emb"][diw_idx]                 # (B, N, diw)
    node_dim = params["node_emb"].shape[1]
    node_emb = jnp.broadcast_to(params["node_emb"][None], (B, N, node_dim))
    static_emb = jnp.concatenate([node_emb, tid_emb, diw_emb], axis=-1)

    # X.transpose(1,2).view(B, N, L*3): per node, flatten (time, feature)
    x_flat = jnp.transpose(X, (0, 2, 1, 3)).reshape(B, N, L * input_dim)

    rows = B * N
    in_ch = L * input_dim
    stat_ch = static_emb.shape[-1]
    embed_dim = params["wts"].shape[1]
    H = embed_dim + stat_ch
    K = params["wr"].shape[0]
    out_w = params["wr"].shape[1]
    num_layers = params["w1"].shape[0]
    assert H == 2 * K, "merged mu||std slab requires hidden_dim == 2*K (even hidden)"

    # Consolidated, lane-padded row input: [x_flat | static_emb | 0], bf16.
    cin = in_ch + stat_ch
    cin_pad = _round_up(cin, 128)
    xs = jnp.concatenate(
        [x_flat.reshape(rows, in_ch), static_emb.reshape(rows, stat_ch)], axis=1)
    xs = jnp.pad(xs, ((0, 0), (0, cin_pad - cin))).astype(jnp.bfloat16)

    # Folded embedding weight: wts in the top-left block, identity for the
    # static embedding channels, zeros elsewhere (removes the in-kernel concat).
    wbig = jnp.zeros((cin_pad, H), jnp.float32)
    wbig = wbig.at[:in_ch, :embed_dim].set(params["wts"])
    wbig = wbig.at[in_ch:cin, embed_dim:].set(jnp.eye(stat_ch, dtype=jnp.float32))
    wbig = wbig.astype(jnp.bfloat16)
    bbig = jnp.concatenate(
        [params["bts"], jnp.zeros((1, stat_ch), jnp.float32)], axis=1)

    # eps: mean of num_sample iid N(0,1) draws == N(0,1)/sqrt(num_sample), so a
    # single scaled draw replaces the (num_sample, rows, K) tensor + mean.
    # Only lanes [0,K) are used (lanes >= K hit zero rows of the padded wr).
    eps_full = (jax.random.normal(eps_key, (rows, H), jnp.float32)
                * (1.0 / float(num_sample) ** 0.5)).astype(jnp.bfloat16)
    eps_eff = eps_full[:, :K].astype(jnp.float32)   # exactly what the kernel sees

    # Lane-dense regression weight/bias: zero-padded to 128 output lanes and to
    # H contraction rows (rows >= K are zero).
    out_pad = 128
    wr_full = (jnp.zeros((H, out_pad), jnp.float32)
               .at[:K, :out_w].set(params["wr"]).astype(jnp.bfloat16))
    br_full = jnp.zeros((1, out_pad), jnp.float32).at[:, :out_w].set(params["br"])

    # Row tiling: large tiles to amortize per-step overhead, near-balanced split
    # to keep padding waste small, and >= 2 grid steps when there is enough work
    # so v7x's two TensorCores both get a block ("parallel" axis).
    tile_floor = 32
    tile_cap = max(tile_floor, min(_round_up(tile_rows, tile_floor),
                                   _round_up(rows, tile_floor)))
    n_steps = pl.cdiv(rows, tile_cap)
    if n_steps == 1 and rows >= 4 * tile_floor:
        n_steps = 2
    tile = _round_up(pl.cdiv(rows, n_steps), tile_floor)
    rows_p = _round_up(rows, tile)
    if rows_p != rows:
        xs = jnp.pad(xs, ((0, rows_p - rows), (0, 0)))
        eps_in = jnp.pad(eps_full, ((0, rows_p - rows), (0, 0)))
    else:
        eps_in = eps_full
    grid = (rows_p // tile,)

    w1 = params["w1"].astype(jnp.bfloat16)
    w2 = params["w2"].astype(jnp.bfloat16)

    row_spec = lambda c: pl.BlockSpec((tile, c), lambda i: (i, 0))
    full2 = lambda a, b: pl.BlockSpec((a, b), lambda i: (0, 0))
    full3 = lambda a, b, c: pl.BlockSpec((a, b, c), lambda i: (0, 0, 0))

    kernel = functools.partial(kdmlp_kernel, num_layers=num_layers, hidden=H, k=K)

    out = pl.pallas_call(
        kernel,
        out_shape=jax.ShapeDtypeStruct((rows_p, H + out_pad), jnp.bfloat16),
        grid_spec=pltpu.PrefetchScalarGridSpec(
            num_scalar_prefetch=0,
            grid=grid,
            in_specs=[
                row_spec(cin_pad),          # xs (bf16)
                row_spec(H),                # eps (bf16)
                full2(cin_pad, H),          # wbig
                full2(1, H),                # bbig
                full3(num_layers, H, H),    # w1
                full3(num_layers, 1, H),    # b1
                full3(num_layers, H, H),    # w2
                full3(num_layers, 1, H),    # b2
                full2(H, out_pad),          # wr (padded, bf16)
                full2(1, out_pad),          # br (padded)
            ],
            out_specs=row_spec(H + out_pad),
        ),
        compiler_params=pltpu.CompilerParams(
            dimension_semantics=("parallel",),
            vmem_limit_bytes=32 * 1024 * 1024,   # safe on v5e/v6e/v7x, room for tile<=2048
        ),
    )(
        xs, eps_in, wbig, bbig, w1, params["b1"], w2, params["b2"],
        wr_full, br_full,
    )

    out = out[:rows].astype(jnp.float32)
    mu_rows = out[:, :K]
    std_rows = out[:, K:H]
    pred_rows = out[:, H:H + out_w]

    # Reshape back to the PyTorch output conventions.
    pred = jnp.transpose(pred_rows.reshape(B, N, out_w), (0, 2, 1))[..., None]  # (B, out_w, N, 1)
    mu = jnp.transpose(mu_rows.reshape(B, N, K), (0, 2, 1))[:, :, None, :]      # (B, K, 1, N)
    std = jnp.transpose(std_rows.reshape(B, N, K), (0, 2, 1))[:, :, None, :]    # (B, K, 1, N)
    return pred, (mu, std), eps_eff


# ----------------------------- reference (pure JAX) ---------------------------


def kdmlp_reference(feats, params, eps_eff):
    """Mirrors the PyTorch forward, with the same bf16 matmul casts the kernel uses."""
    B, L, N, _ = feats.shape
    X = feats[..., :3]
    tid_idx = feats[:, -1, :, -2].astype(jnp.int32)
    diw_idx = feats[:, -1, :, -1].astype(jnp.int32)
    tid_emb = params["time_in_day_emb"][tid_idx]
    diw_emb = params["day_in_week_emb"][diw_idx]
    node_emb = jnp.broadcast_to(
        params["node_emb"][None], (B, N, params["node_emb"].shape[1]))
    static_emb = jnp.concatenate([node_emb, tid_emb, diw_emb], axis=-1)

    rows = B * N
    K = params["wr"].shape[0]
    x2 = jnp.transpose(X, (0, 2, 1, 3)).reshape(rows, -1).astype(jnp.bfloat16)

    ts = jnp.dot(x2, params["wts"].astype(jnp.bfloat16),
                 preferred_element_type=jnp.float32) + params["bts"]
    stat = static_emb.reshape(rows, -1).astype(jnp.bfloat16).astype(jnp.float32)
    h = jnp.concatenate([ts, stat], axis=1)
    for l in range(params["w1"].shape[0]):
        hid = jnp.dot(h.astype(jnp.bfloat16), params["w1"][l].astype(jnp.bfloat16),
                      preferred_element_type=jnp.float32) + params["b1"][l]
        hid = jnp.maximum(hid, 0.0)
        h = jnp.dot(hid.astype(jnp.bfloat16), params["w2"][l].astype(jnp.bfloat16),
                    preferred_element_type=jnp.float32) + params["b2"][l] + h
    mu = h[:, :K]
    pre = h[:, K:]
    std = jnp.maximum(pre, 0.0) + jnp.log1p(jnp.exp(-jnp.abs(pre)))
    z = (mu + eps_eff * std).astype(jnp.bfloat16)
    pred = jnp.dot(z, params["wr"].astype(jnp.bfloat16),
                   preferred_element_type=jnp.float32) + params["br"]

    pred = jnp.transpose(pred.reshape(B, N, -1), (0, 2, 1))[..., None]
    mu = jnp.transpose(mu.reshape(B, N, K), (0, 2, 1))[:, :, None, :]
    std = jnp.transpose(std.reshape(B, N, K), (0, 2, 1))[:, :, None, :]
    return pred, mu, std


# ----------------------------- setup ------------------------------------------


def make_params(key, *, input_window, input_dim, embed_dim, node_dim,
                temp_dim_tid, temp_dim_diw, num_nodes, num_layers, output_window):
    hidden_dim = embed_dim + temp_dim_tid + temp_dim_diw + node_dim
    K = hidden_dim // 2

    def xavier(k, shape):
        fan_in, fan_out = shape[-2], shape[-1]
        bound = (6.0 / (fan_in + fan_out)) ** 0.5
        return jax.random.uniform(k, shape, jnp.float32, -bound, bound)

    ks = jax.random.split(key, 12)
    params = {
        "time_in_day_emb": xavier(ks[0], (48, temp_dim_tid)),
        "day_in_week_emb": xavier(ks[1], (7, temp_dim_diw)),
        "node_emb": xavier(ks[2], (num_nodes, node_dim)),
        # conv weights stored transposed: (C_in, C_out)
        "wts": xavier(ks[3], (input_dim * input_window, embed_dim)),
        "bts": 0.01 * jax.random.normal(ks[4], (1, embed_dim), jnp.float32),
        "w1": xavier(ks[5], (num_layers, hidden_dim, hidden_dim)),
        "b1": 0.01 * jax.random.normal(ks[6], (num_layers, 1, hidden_dim), jnp.float32),
        "w2": xavier(ks[7], (num_layers, hidden_dim, hidden_dim)),
        "b2": 0.01 * jax.random.normal(ks[8], (num_layers, 1, hidden_dim), jnp.float32),
        "wr": xavier(ks[9], (K, output_window)),
        "br": 0.01 * jax.random.normal(ks[10], (1, output_window), jnp.float32),
    }
    return params, hidden_dim, K


if __name__ == "__main__":
    # Small deterministic config (consistent with the module's forward).
    B, L, N = 2, 4, 16              # batch, input_window, num_nodes
    input_dim = 3
    embed_dim = node_dim = temp_dim_tid = temp_dim_diw = 32   # hidden_dim = 128
    num_layers = 2
    output_window = 4
    num_sample = 1

    root = jax.random.PRNGKey(0)
    k_param, k_x, k_tid, k_diw, k_eps = jax.random.split(root, 5)

    params, hidden_dim, K = make_params(
        k_param,
        input_window=L, input_dim=input_dim, embed_dim=embed_dim,
        node_dim=node_dim, temp_dim_tid=temp_dim_tid, temp_dim_diw=temp_dim_diw,
        num_nodes=N, num_layers=num_layers, output_window=output_window)

    # feats: (B, L, N, 5) = 3 data channels + time-in-day idx + day-in-week idx
    data = jax.random.normal(k_x, (B, L, N, input_dim), jnp.float32)
    tid = jax.random.randint(k_tid, (B, L, N, 1), 0, 48).astype(jnp.float32)
    diw = jax.random.randint(k_diw, (B, L, N, 1), 0, 7).astype(jnp.float32)
    feats = jnp.concatenate([data, tid, diw], axis=-1)

    (pred, (mu, std), eps_eff) = kdmlp_forward(
        feats, params, num_sample=num_sample, eps_key=k_eps, tile_rows=2048)
    jax.block_until_ready((pred, mu, std))

    # sanity check against a pure-JAX reference (same bf16 matmul casts; the
    # kernel additionally rounds its outputs to bf16, hence the 2e-2 tolerance)
    pred_r, mu_r, std_r = kdmlp_reference(feats, params, eps_eff)
    assert pred.shape == (B, output_window, N, 1)
    assert mu.shape == (B, K, 1, N) and std.shape == (B, K, 1, N)
    assert jnp.allclose(pred, pred_r, rtol=2e-2, atol=2e-2)
    assert jnp.allclose(mu, mu_r, rtol=2e-2, atol=2e-2)
    assert jnp.allclose(std, std_r, rtol=2e-2, atol=2e-2)

    print("KERNEL_OK")
</pallas_src>

<mosaic_0001>
module attributes {stable_mosaic.version = 11 : i64} {
  func.func @kdmlp_kernel(%arg0: i32, %arg1: memref<32x128xbf16, #tpu.memory_space<vmem>>, %arg2: memref<32x128xbf16, #tpu.memory_space<vmem>>, %arg3: memref<128x128xbf16, #tpu.memory_space<vmem>>, %arg4: memref<1x128xf32, #tpu.memory_space<vmem>>, %arg5: memref<2x128x128xbf16, #tpu.memory_space<vmem>>, %arg6: memref<2x1x128xf32, #tpu.memory_space<vmem>>, %arg7: memref<2x128x128xbf16, #tpu.memory_space<vmem>>, %arg8: memref<2x1x128xf32, #tpu.memory_space<vmem>>, %arg9: memref<128x128xbf16, #tpu.memory_space<vmem>>, %arg10: memref<1x128xf32, #tpu.memory_space<vmem>>, %arg11: memref<32x256xbf16, #tpu.memory_space<vmem>>) attributes {dimension_semantics = [#tpu.dimension_semantics<parallel>], iteration_bounds = array<i64: 1>, scalar_prefetch = 0 : i64, scratch_operands = 0 : i64, tpu.core_type = #tpu.core_type<tc>, window_params = [{transform_indices = @transform_0, window_bounds = array<i64: 32, 128>}, {transform_indices = @transform_1, window_bounds = array<i64: 32, 128>}, {pipeline_mode = #tpu.pipeline_mode<synchronous>, transform_indices = @transform_2, window_bounds = array<i64: 128, 128>}, {pipeline_mode = #tpu.pipeline_mode<synchronous>, transform_indices = @transform_3, window_bounds = array<i64: 1, 128>}, {pipeline_mode = #tpu.pipeline_mode<synchronous>, transform_indices = @transform_4, window_bounds = array<i64: 2, 128, 128>}, {pipeline_mode = #tpu.pipeline_mode<synchronous>, transform_indices = @transform_5, window_bounds = array<i64: 2, 1, 128>}, {pipeline_mode = #tpu.pipeline_mode<synchronous>, transform_indices = @transform_6, window_bounds = array<i64: 2, 128, 128>}, {pipeline_mode = #tpu.pipeline_mode<synchronous>, transform_indices = @transform_7, window_bounds = array<i64: 2, 1, 128>}, {pipeline_mode = #tpu.pipeline_mode<synchronous>, transform_indices = @transform_8, window_bounds = array<i64: 128, 128>}, {pipeline_mode = #tpu.pipeline_mode<synchronous>, transform_indices = @transform_9, window_bounds = array<i64: 1, 128>}, {transform_indices = @transform_10, window_bounds = array<i64: 32, 256>}]} {
    %c0 = arith.constant 0 : index
    %c0_0 = arith.constant 0 : index
    %0 = vector.load %arg1[%c0, %c0_0] : memref<32x128xbf16, #tpu.memory_space<vmem>>, vector<32x128xbf16>
    %c0_1 = arith.constant 0 : index
    %c0_2 = arith.constant 0 : index
    %1 = vector.load %arg3[%c0_1, %c0_2] : memref<128x128xbf16, #tpu.memory_space<vmem>>, vector<128x128xbf16>
    %cst = arith.constant dense<0.000000e+00> : vector<32x128xf32>
    %2 = tpu.matmul %0, %1, %cst {dimension_numbers = #tpu.dot_dimension_numbers<[1], [0], [0], [1], [0, 0, 1, 1], [], []>} : vector<32x128xbf16>, vector<128x128xbf16>, vector<32x128xf32> -> vector<32x128xf32>
    %c0_3 = arith.constant 0 : index
    %c0_4 = arith.constant 0 : index
    %3 = vector.load %arg4[%c0_3, %c0_4] : memref<1x128xf32, #tpu.memory_space<vmem>>, vector<1x128xf32>
    %4 = vector.broadcast %3 : vector<1x128xf32> to vector<32x128xf32>
    %5 = arith.addf %2, %4 : vector<32x128xf32>
    %6 = arith.truncf %5 : vector<32x128xf32> to vector<32x128xbf16>
    %c0_5 = arith.constant 0 : index
    %c0_6 = arith.constant 0 : index
    %c0_7 = arith.constant 0 : index
    %7 = vector.load %arg5[%c0_5, %c0_6, %c0_7] : memref<2x128x128xbf16, #tpu.memory_space<vmem>>, vector<1x128x128xbf16>
    %8 = vector.shape_cast %7 : vector<1x128x128xbf16> to vector<128x128xbf16>
    %cst_8 = arith.constant dense<0.000000e+00> : vector<32x128xf32>
    %9 = tpu.matmul %6, %8, %cst_8 {dimension_numbers = #tpu.dot_dimension_numbers<[1], [0], [0], [1], [0, 0, 1, 1], [], []>} : vector<32x128xbf16>, vector<128x128xbf16>, vector<32x128xf32> -> vector<32x128xf32>
    %c0_9 = arith.constant 0 : index
    %c0_10 = arith.constant 0 : index
    %c0_11 = arith.constant 0 : index
    %10 = vector.load %arg6[%c0_9, %c0_10, %c0_11] : memref<2x1x128xf32, #tpu.memory_space<vmem>>, vector<1x1x128xf32>
    %11 = vector.shape_cast %10 : vector<1x1x128xf32> to vector<1x128xf32>
    %12 = vector.broadcast %11 : vector<1x128xf32> to vector<32x128xf32>
    %13 = arith.addf %9, %12 : vector<32x128xf32>
    %cst_12 = arith.constant 0.000000e+00 : f32
    %14 = vector.broadcast %cst_12 : f32 to vector<32x128xf32>
    %15 = arith.maximumf %13, %14 : vector<32x128xf32>
    %16 = arith.truncf %15 : vector<32x128xf32> to vector<32x128xbf16>
    %c0_13 = arith.constant 0 : index
    %c0_14 = arith.constant 0 : index
    %c0_15 = arith.constant 0 : index
    %17 = vector.load %arg7[%c0_13, %c0_14, %c0_15] : memref<2x128x128xbf16, #tpu.memory_space<vmem>>, vector<1x128x128xbf16>
    %18 = vector.shape_cast %17 : vector<1x128x128xbf16> to vector<128x128xbf16>
    %cst_16 = arith.constant dense<0.000000e+00> : vector<32x128xf32>
    %19 = tpu.matmul %16, %18, %cst_16 {dimension_numbers = #tpu.dot_dimension_numbers<[1], [0], [0], [1], [0, 0, 1, 1], [], []>} : vector<32x128xbf16>, vector<128x128xbf16>, vector<32x128xf32> -> vector<32x128xf32>
    %c0_17 = arith.constant 0 : index
    %c0_18 = arith.constant 0 : index
    %c0_19 = arith.constant 0 : index
    %20 = vector.load %arg8[%c0_17, %c0_18, %c0_19] : memref<2x1x128xf32, #tpu.memory_space<vmem>>, vector<1x1x128xf32>
    %21 = vector.shape_cast %20 : vector<1x1x128xf32> to vector<1x128xf32>
    %22 = vector.broadcast %21 : vector<1x128xf32> to vector<32x128xf32>
    %23 = arith.addf %19, %22 : vector<32x128xf32>
    %24 = arith.addf %23, %5 : vector<32x128xf32>
    %25 = arith.truncf %24 : vector<32x128xf32> to vector<32x128xbf16>
    %c1 = arith.constant 1 : index
    %c0_20 = arith.constant 0 : index
    %c0_21 = arith.constant 0 : index
    %26 = vector.load %arg5[%c1, %c0_20, %c0_21] : memref<2x128x128xbf16, #tpu.memory_space<vmem>>, vector<1x128x128xbf16>
    %27 = vector.shape_cast %26 : vector<1x128x128xbf16> to vector<128x128xbf16>
    %cst_22 = arith.constant dense<0.000000e+00> : vector<32x128xf32>
    %28 = tpu.matmul %25, %27, %cst_22 {dimension_numbers = #tpu.dot_dimension_numbers<[1], [0], [0], [1], [0, 0, 1, 1], [], []>} : vector<32x128xbf16>, vector<128x128xbf16>, vector<32x128xf32> -> vector<32x128xf32>
    %c1_23 = arith.constant 1 : index
    %c0_24 = arith.constant 0 : index
    %c0_25 = arith.constant 0 : index
    %29 = vector.load %arg6[%c1_23, %c0_24, %c0_25] : memref<2x1x128xf32, #tpu.memory_space<vmem>>, vector<1x1x128xf32>
    %30 = vector.shape_cast %29 : vector<1x1x128xf32> to vector<1x128xf32>
    %31 = vector.broadcast %30 : vector<1x128xf32> to vector<32x128xf32>
    %32 = arith.addf %28, %31 : vector<32x128xf32>
    %cst_26 = arith.constant 0.000000e+00 : f32
    %33 = vector.broadcast %cst_26 : f32 to vector<32x128xf32>
    %34 = arith.maximumf %32, %33 : vector<32x128xf32>
    %35 = arith.truncf %34 : vector<32x128xf32> to vector<32x128xbf16>
    %c1_27 = arith.constant 1 : index
    %c0_28 = arith.constant 0 : index
    %c0_29 = arith.constant 0 : index
    %36 = vector.load %arg7[%c1_27, %c0_28, %c0_29] : memref<2x128x128xbf16, #tpu.memory_space<vmem>>, vector<1x128x128xbf16>
    %37 = vector.shape_cast %36 : vector<1x128x128xbf16> to vector<128x128xbf16>
    %cst_30 = arith.constant dense<0.000000e+00> : vector<32x128xf32>
    %38 = tpu.matmul %35, %37, %cst_30 {dimension_numbers = #tpu.dot_dimension_numbers<[1], [0], [0], [1], [0, 0, 1, 1], [], []>} : vector<32x128xbf16>, vector<128x128xbf16>, vector<32x128xf32> -> vector<32x128xf32>
    %c1_31 = arith.constant 1 : index
    %c0_32 = arith.constant 0 : index
    %c0_33 = arith.constant 0 : index
    %39 = vector.load %arg8[%c1_31, %c0_32, %c0_33] : memref<2x1x128xf32, #tpu.memory_space<vmem>>, vector<1x1x128xf32>
    %40 = vector.shape_cast %39 : vector<1x1x128xf32> to vector<1x128xf32>
    %41 = vector.broadcast %40 : vector<1x128xf32> to vector<32x128xf32>
    %42 = arith.addf %38, %41 : vector<32x128xf32>
    %43 = arith.addf %42, %24 : vector<32x128xf32>
    %cst_34 = arith.constant 0.000000e+00 : f32
    %44 = vector.broadcast %cst_34 : f32 to vector<32x128xf32>
    %45 = arith.maximumf %43, %44 : vector<32x128xf32>
    %46 = math.absf %43 : vector<32x128xf32>
    %cst_35 = arith.constant 0.000000e+00 : f32
    %47 = vector.broadcast %cst_35 : f32 to vector<32x128xf32>
    %48 = arith.subf %47, %46 : vector<32x128xf32>
    %49 = math.exp %48 : vector<32x128xf32>
    %50 = math.log1p %49 : vector<32x128xf32>
    %51 = arith.addf %45, %50 : vector<32x128xf32>
    %52 = tpu.iota {dimensions = array<i32: 1>} : vector<1x128xi32>
    %c64_i32 = arith.constant 64 : i32
    %53 = vector.broadcast %c64_i32 : i32 to vector<1x128xi32>
    %54 = arith.cmpi slt, %52, %53 : vector<1x128xi32>
    %55 = vector.shape_cast %54 : vector<1x128xi1> to vector<1x128xi1>
    %56 = vector.broadcast %55 : vector<1x128xi1> to vector<32x128xi1>
    %57 = arith.select %56, %43, %51 : vector<32x128xi1>, vector<32x128xf32>
    %58 = arith.truncf %57 : vector<32x128xf32> to vector<32x128xbf16>
    %c0_36 = arith.constant 0 : index
    %c0_37 = arith.constant 0 : index
    %59 = vector.load %arg11[%c0_36, %c0_37] : memref<32x256xbf16, #tpu.memory_space<vmem>>, vector<32x128xbf16>
    tpu.vector_store %arg11[%c0_36, %c0_37], %58 {strides = array<i32>} : memref<32x256xbf16, #tpu.memory_space<vmem>>, vector<32x128xbf16>,
    %c64_i32_38 = arith.constant 64 : i32
    %60 = tpu.dynamic_rotate %51 by %c64_i32_38 dim 1 : vector<32x128xf32>, i32 -> vector<32x128xf32>
    %c0_39 = arith.constant 0 : index
    %c0_40 = arith.constant 0 : index
    %61 = vector.load %arg2[%c0_39, %c0_40] : memref<32x128xbf16, #tpu.memory_space<vmem>>, vector<32x128xbf16>
    %62 = arith.extf %61 : vector<32x128xbf16> to vector<32x128xf32>
    %63 = arith.mulf %62, %60 : vector<32x128xf32>
    %64 = arith.addf %43, %63 : vector<32x128xf32>
    %65 = arith.truncf %64 : vector<32x128xf32> to vector<32x128xbf16>
    %c0_41 = arith.constant 0 : index
    %c0_42 = arith.constant 0 : index
    %66 = vector.load %arg9[%c0_41, %c0_42] : memref<128x128xbf16, #tpu.memory_space<vmem>>, vector<128x128xbf16>
    %cst_43 = arith.constant dense<0.000000e+00> : vector<32x128xf32>
    %67 = tpu.matmul %65, %66, %cst_43 {dimension_numbers = #tpu.dot_dimension_numbers<[1], [0], [0], [1], [0, 0, 1, 1], [], []>} : vector<32x128xbf16>, vector<128x128xbf16>, vector<32x128xf32> -> vector<32x128xf32>
    %c0_44 = arith.constant 0 : index
    %c0_45 = arith.constant 0 : index
    %68 = vector.load %arg10[%c0_44, %c0_45] : memref<1x128xf32, #tpu.memory_space<vmem>>, vector<1x128xf32>
    %69 = vector.broadcast %68 : vector<1x128xf32> to vector<32x128xf32>
    %70 = arith.addf %67, %69 : vector<32x128xf32>
    %71 = arith.truncf %70 : vector<32x128xf32> to vector<32x128xbf16>
    %c0_46 = arith.constant 0 : index
    %c128 = arith.constant 128 : index
    %72 = vector.load %arg11[%c0_46, %c128] : memref<32x256xbf16, #tpu.memory_space<vmem>>, vector<32x128xbf16>
    tpu.vector_store %arg11[%c0_46, %c128], %71 {strides = array<i32>} : memref<32x256xbf16, #tpu.memory_space<vmem>>, vector<32x128xbf16>,
    return
  }
  func.func @transform_0(%arg0: i32) -> (i32, i32) {
    %c0_i32 = arith.constant 0 : i32
    %c0_i32_0 = arith.constant 0 : i32
    return %arg0, %c0_i32 : i32, i32
  }
  func.func @transform_1(%arg0: i32) -> (i32, i32) {
    %c0_i32 = arith.constant 0 : i32
    %c0_i32_0 = arith.constant 0 : i32
    return %arg0, %c0_i32 : i32, i32
  }
  func.func @transform_2(%arg0: i32) -> (i32, i32) {
    %c0_i32 = arith.constant 0 : i32
    %c0_i32_0 = arith.constant 0 : i32
    %c0_i32_1 = arith.constant 0 : i32
    return %c0_i32, %c0_i32_0 : i32, i32
  }
  func.func @transform_3(%arg0: i32) -> (i32, i32) {
    %c0_i32 = arith.constant 0 : i32
    %c0_i32_0 = arith.constant 0 : i32
    %c0_i32_1 = arith.constant 0 : i32
    return %c0_i32, %c0_i32_0 : i32, i32
  }
  func.func @transform_4(%arg0: i32) -> (i32, i32, i32) {
    %c0_i32 = arith.constant 0 : i32
    %c0_i32_0 = arith.constant 0 : i32
    %c0_i32_1 = arith.constant 0 : i32
    %c0_i32_2 = arith.constant 0 : i32
    return %c0_i32, %c0_i32_0, %c0_i32_1 : i32, i32, i32
  }
  func.func @transform_5(%arg0: i32) -> (i32, i32, i32) {
    %c0_i32 = arith.constant 0 : i32
    %c0_i32_0 = arith.constant 0 : i32
    %c0_i32_1 = arith.constant 0 : i32
    %c0_i32_2 = arith.constant 0 : i32
    return %c0_i32, %c0_i32_0, %c0_i32_1 : i32, i32, i32
  }
  func.func @transform_6(%arg0: i32) -> (i32, i32, i32) {
    %c0_i32 = arith.constant 0 : i32
    %c0_i32_0 = arith.constant 0 : i32
    %c0_i32_1 = arith.constant 0 : i32
    %c0_i32_2 = arith.constant 0 : i32
    return %c0_i32, %c0_i32_0, %c0_i32_1 : i32, i32, i32
  }
  func.func @transform_7(%arg0: i32) -> (i32, i32, i32) {
    %c0_i32 = arith.constant 0 : i32
    %c0_i32_0 = arith.constant 0 : i32
    %c0_i32_1 = arith.constant 0 : i32
    %c0_i32_2 = arith.constant 0 : i32
    return %c0_i32, %c0_i32_0, %c0_i32_1 : i32, i32, i32
  }
  func.func @transform_8(%arg0: i32) -> (i32, i32) {
    %c0_i32 = arith.constant 0 : i32
    %c0_i32_0 = arith.constant 0 : i32
    %c0_i32_1 = arith.constant 0 : i32
    return %c0_i32, %c0_i32_0 : i32, i32
  }
  func.func @transform_9(%arg0: i32) -> (i32, i32) {
    %c0_i32 = arith.constant 0 : i32
    %c0_i32_0 = arith.constant 0 : i32
    %c0_i32_1 = arith.constant 0 : i32
    return %c0_i32, %c0_i32_0 : i32, i32
  }
  func.func @transform_10(%arg0: i32) -> (i32, i32) {
    %c0_i32 = arith.constant 0 : i32
    %c0_i32_0 = arith.constant 0 : i32
    return %arg0, %c0_i32 : i32, i32
  }
}

</mosaic_0001>

<llo_original>
// kernel: tpu_custom_call.1
$region0: #{tpu_custom_call.1}
  #allocation0 [shape = 'u32[]', space=smem, size = 0x4, offset = 0x4, fixed_abs, tag = 'smem constant byte address 0x4 - core index']
  #allocation1 [shape = 'u32[72,128]{1,0:T(1,128)}', space=vmem, size = 0x9000, scoped, tag = 'internal scratch']
  %s0 = inlined_call_operand.hbm [shape: bf16[32,128], index: 0, kind: input, shape index: {}]
  %s1 = inlined_call_operand.hbm [shape: bf16[32,128], index: 1, kind: input, shape index: {}]
  %s2 = inlined_call_operand.hbm [shape: bf16[128,128], index: 2, kind: input, shape index: {}]
  %s3 = inlined_call_operand.hbm [shape: f32[1,128], index: 3, kind: input, shape index: {}]
  %s4 = inlined_call_operand.hbm [shape: bf16[2,128,128], index: 4, kind: input, shape index: {}]
  %s5 = inlined_call_operand.vmem [shape: f32[2,1,128], index: 5, kind: input, shape index: {}]
  %s6 = inlined_call_operand.hbm [shape: bf16[2,128,128], index: 6, kind: input, shape index: {}]
  %s7 = inlined_call_operand.vmem [shape: f32[2,1,128], index: 7, kind: input, shape index: {}]
  %s8 = inlined_call_operand.hbm [shape: bf16[128,128], index: 8, kind: input, shape index: {}]
  %s9 = inlined_call_operand.vmem [shape: f32[1,128], index: 9, kind: input, shape index: {}]
  %s10 = inlined_call_operand.hbm [shape: bf16[32,256], index: 10, kind: output, shape index: {}]
  %s11 = sld [smem:[#allocation0]]
  $region78: #{tpu_custom_call.1} parent=0
    _
  %s13 = ssub.s32 1, %s11
  %s14 = scalar_select 0, %s13, %s11
  $region1: #{tpu_custom_call.1} parent=0
    #allocation2 [shape = 'u8[8192]{0}', space=vmem, size = 0x2000, scoped, tag = 'input window, operand 0, single buffered']
    #allocation3 [shape = 's32[1]{0}', space=sflag, size = 0x4, scoped, tag = 'scoped memory for tpu_custom_call.1']
    #allocation4 [shape = 's32[1]{0}', space=sflag, size = 0x4, scoped, tag = 'scoped memory for tpu_custom_call.1']
    #allocation5 [shape = 'u8[8192]{0}', space=vmem, size = 0x2000, scoped, tag = 'input window, operand 1, single buffered']
    #allocation6 [shape = 's32[1]{0}', space=sflag, size = 0x4, scoped, tag = 'scoped memory for tpu_custom_call.1']
    #allocation7 [shape = 'u8[32768]{0}', space=vmem, size = 0x8000, scoped, tag = 'input window, operand 2, single buffered']
    #allocation8 [shape = 'u8[512]{0}', space=vmem, size = 0x400, scoped, tag = 'input window, operand 3, single buffered']
    #allocation9 [shape = 's32[1]{0}', space=sflag, size = 0x4, scoped, tag = 'scoped memory for tpu_custom_call.1']
    #allocation10 [shape = 'u8[65536]{0}', space=vmem, size = 0x10000, scoped, tag = 'input window, operand 4, single buffered']
    #allocation11 [shape = 'u8[65536]{0}', space=vmem, size = 0x10000, scoped, tag = 'input window, operand 6, single buffered']
    #allocation12 [shape = 's32[1]{0}', space=sflag, size = 0x4, scoped, tag = 'scoped memory for tpu_custom_call.1']
    #allocation13 [shape = 'u8[32768]{0}', space=vmem, size = 0x8000, scoped, tag = 'input window, operand 8, single buffered']
    #allocation14 [shape = 'u8[16384]{0}', space=vmem, size = 0x4000, scoped, tag = 'output window, operand 0, single buffered']
    %15 = vsyncpa [#allocation3], 0
    %16 = vsyncpa [#allocation6], 0
    %17 = vsyncpa [#allocation9], 0
    %18 = vsyncpa [#allocation12], 0
    %19 = vsyncpa [#allocation4], 0
    // Predicated region
    $region2: #{tpu_custom_call.1} parent=1 // pred_check
      _
    $region3: #{tpu_custom_call.1} parent=1 // pred_check_branch
      %21 = sbr.rel (0) target = $region5
    $region4: #{tpu_custom_call.1} parent=1 // pred_region
      %23 = vsyncadd [#allocation3], 0
      %s24 = sshll.u32 %s0, 4
      %s25 = int_to_ptr.hbm [resolvable:$true] %s24
      %s26 = sshll.u32 [#allocation2], 4
      %s27 = int_to_ptr.vmem [resolvable:$true] %s26
      %32 = dma.hbm_to_vmem [thread:$0]  %s25, 256, %s27, [#allocation3], 64, 64, 4
    $region5: #{tpu_custom_call.1} parent=1 // pred_fallthru
      _
    // Predicated region
    $region6: #{tpu_custom_call.1} parent=1 // pred_check
      _
    $region7: #{tpu_custom_call.1} parent=1 // pred_check_branch
      %34 = sbr.rel (0) target = $region9
    $region8: #{tpu_custom_call.1} parent=1 // pred_region
      %36 = vsyncadd [#allocation6], 0
      %s37 = sshll.u32 %s1, 4
      %s38 = int_to_ptr.hbm [resolvable:$true] %s37
      %s39 = sshll.u32 [#allocation5], 4
      %s40 = int_to_ptr.vmem [resolvable:$true] %s39
      %45 = dma.hbm_to_vmem [thread:$0]  %s38, 256, %s40, [#allocation6], 64, 64, 4
    $region9: #{tpu_custom_call.1} parent=1 // pred_fallthru
      _
    // Predicated region
    $region10: #{tpu_custom_call.1} parent=1 // pred_check
      _
    $region11: #{tpu_custom_call.1} parent=1 // pred_check_branch
      %47 = sbr.rel (0) target = $region13
    $region12: #{tpu_custom_call.1} parent=1 // pred_region
      %49 = vsyncadd [#allocation6], 0
      %s50 = sshll.u32 %s2, 4
      %s51 = int_to_ptr.hbm [resolvable:$true] %s50
      %s52 = sshll.u32 [#allocation7], 4
      %s53 = int_to_ptr.vmem [resolvable:$true] %s52
      %58 = dma.hbm_to_vmem [thread:$0]  %s51, 1024, %s53, [#allocation6], 64, 64, 4
    $region13: #{tpu_custom_call.1} parent=1 // pred_fallthru
      _
    // Predicated region
    $region14: #{tpu_custom_call.1} parent=1 // pred_check
      _
    $region15: #{tpu_custom_call.1} parent=1 // pred_check_branch
      %60 = sbr.rel (0) target = $region17
    $region16: #{tpu_custom_call.1} parent=1 // pred_region
      %62 = vsyncadd [#allocation9], 0
      %s64 = sshll.u32 %s3, 4
      %s65 = int_to_ptr.hbm [resolvable:$true] %s64
      %s66 = sshll.u32 [#allocation8], 4
      %s67 = int_to_ptr.vmem [resolvable:$true] %s66
      %69 = dma.hbm_to_vmem [thread:$0]  %s65, 16, %s67, [#allocation9]
    $region17: #{tpu_custom_call.1} parent=1 // pred_fallthru
      _
    // Predicated region
    $region18: #{tpu_custom_call.1} parent=1 // pred_check
      _
    $region19: #{tpu_custom_call.1} parent=1 // pred_check_branch
      %71 = sbr.rel (0) target = $region21
    $region20: #{tpu_custom_call.1} parent=1 // pred_region
      %73 = vsyncadd [#allocation9], 0
      %s74 = sshll.u32 %s4, 4
      %s75 = int_to_ptr.hbm [resolvable:$true] %s74
      %s76 = sshll.u32 [#allocation10], 4
      %s77 = int_to_ptr.vmem [resolvable:$true] %s76
      %82 = dma.hbm_to_vmem [thread:$0]  %s75, 2048, %s77, [#allocation9], 64, 64, 4
    $region21: #{tpu_custom_call.1} parent=1 // pred_fallthru
      _
    // Predicated region
    $region22: #{tpu_custom_call.1} parent=1 // pred_check
      _
    $region23: #{tpu_custom_call.1} parent=1 // pred_check_branch
      %84 = sbr.rel (0) target = $region25
    $region24: #{tpu_custom_call.1} parent=1 // pred_region
      _
    $region25: #{tpu_custom_call.1} parent=1 // pred_fallthru
      _
    // Predicated region
    $region26: #{tpu_custom_call.1} parent=1 // pred_check
      _
    $region27: #{tpu_custom_call.1} parent=1 // pred_check_branch
      %86 = sbr.rel (0) target = $region29
    $region28: #{tpu_custom_call.1} parent=1 // pred_region
      %88 = vsyncadd [#allocation12], 0
      %s89 = sshll.u32 %s6, 4
      %s90 = int_to_ptr.hbm [resolvable:$true] %s89
      %s91 = sshll.u32 [#allocation11], 4
      %s92 = int_to_ptr.vmem [resolvable:$true] %s91
      %97 = dma.hbm_to_vmem [thread:$0]  %s90, 2048, %s92, [#allocation12], 64, 64, 4
    $region29: #{tpu_custom_call.1} parent=1 // pred_fallthru
      _
    // Predicated region
    $region30: #{tpu_custom_call.1} parent=1 // pred_check
      _
    $region31: #{tpu_custom_call.1} parent=1 // pred_check_branch
      %99 = sbr.rel (0) target = $region33
    $region32: #{tpu_custom_call.1} parent=1 // pred_region
      _
    $region33: #{tpu_custom_call.1} parent=1 // pred_fallthru
      _
    // Predicated region
    $region34: #{tpu_custom_call.1} parent=1 // pred_check
      _
    $region35: #{tpu_custom_call.1} parent=1 // pred_check_branch
      %101 = sbr.rel (0) target = $region37
    $region36: #{tpu_custom_call.1} parent=1 // pred_region
      %103 = vsyncadd [#allocation12], 0
      %s104 = sshll.u32 %s8, 4
      %s105 = int_to_ptr.hbm [resolvable:$true] %s104
      %s106 = sshll.u32 [#allocation13], 4
      %s107 = int_to_ptr.vmem [resolvable:$true] %s106
      %112 = dma.hbm_to_vmem [thread:$0]  %s105, 1024, %s107, [#allocation12], 64, 64, 4
    $region37: #{tpu_custom_call.1} parent=1 // pred_fallthru
      _
    // Predicated region
    $region38: #{tpu_custom_call.1} parent=1 // pred_check
      _
    $region39: #{tpu_custom_call.1} parent=1 // pred_check_branch
      %114 = sbr.rel (0) target = $region41
    $region40: #{tpu_custom_call.1} parent=1 // pred_region
      _
    $region41: #{tpu_custom_call.1} parent=1 // pred_fallthru
      _
    // Predicated region
    $region42: #{tpu_custom_call.1} parent=1 // pred_check
      _
    $region43: #{tpu_custom_call.1} parent=1 // pred_check_branch
      %116 = sbr.rel (0) target = $region45
    $region44: #{tpu_custom_call.1} parent=1 // pred_region
      %118 = dma.done [#allocation3], 256
    $region45: #{tpu_custom_call.1} parent=1 // pred_fallthru
      _
    // Predicated region
    $region46: #{tpu_custom_call.1} parent=1 // pred_check
      _
    $region47: #{tpu_custom_call.1} parent=1 // pred_check_branch
      %120 = sbr.rel (0) target = $region49
    $region48: #{tpu_custom_call.1} parent=1 // pred_region
      %122 = dma.done [#allocation6], 256
    $region49: #{tpu_custom_call.1} parent=1 // pred_fallthru
      _
    // Predicated region
    $region50: #{tpu_custom_call.1} parent=1 // pred_check
      _
    $region51: #{tpu_custom_call.1} parent=1 // pred_check_branch
      %124 = sbr.rel (0) target = $region53
    $region52: #{tpu_custom_call.1} parent=1 // pred_region
      %126 = dma.done [#allocation6], 1024
    $region53: #{tpu_custom_call.1} parent=1 // pred_fallthru
      _
    // Predicated region
    $region54: #{tpu_custom_call.1} parent=1 // pred_check
      _
    $region55: #{tpu_custom_call.1} parent=1 // pred_check_branch
      %128 = sbr.rel (0) target = $region57
    $region56: #{tpu_custom_call.1} parent=1 // pred_region
      %130 = dma.done [#allocation9], 16
    $region57: #{tpu_custom_call.1} parent=1 // pred_fallthru
      _
    // Predicated region
    $region58: #{tpu_custom_call.1} parent=1 // pred_check
      _
    $region59: #{tpu_custom_call.1} parent=1 // pred_check_branch
      %132 = sbr.rel (0) target = $region61
    $region60: #{tpu_custom_call.1} parent=1 // pred_region
      %134 = dma.done [#allocation9], 2048
    $region61: #{tpu_custom_call.1} parent=1 // pred_fallthru
      _
    // Predicated region
    $region62: #{tpu_custom_call.1} parent=1 // pred_check
      _
    $region63: #{tpu_custom_call.1} parent=1 // pred_check_branch
      %136 = sbr.rel (0) target = $region65
    $region64: #{tpu_custom_call.1} parent=1 // pred_region
      %138 = dma.done [#allocation12], 2048
    $region65: #{tpu_custom_call.1} parent=1 // pred_fallthru
      _
    // Predicated region
    $region66: #{tpu_custom_call.1} parent=1 // pred_check
      _
    $region67: #{tpu_custom_call.1} parent=1 // pred_check_branch
      %140 = sbr.rel (0) target = $region69
    $region68: #{tpu_custom_call.1} parent=1 // pred_region
      %142 = dma.done [#allocation12], 1024
    $region69: #{tpu_custom_call.1} parent=1 // pred_fallthru
      _
    %v143 = vld [vmem:[#allocation2] sm:$0xf]
    %v144 = vld [vmem:[#allocation2 + $0x4] sm:$0xf]
    %v145 = vld [vmem:[#allocation2 + $0x8] sm:$0xf]
    %v146 = vld [vmem:[#allocation2 + $0xc] sm:$0xf]
    %v147 = vld [vmem:[#allocation7] sm:$0xf]
    %v148 = vld [vmem:[#allocation7 + $0x4] sm:$0xf]
    %v149 = vld [vmem:[#allocation7 + $0x8] sm:$0xf]
    %v150 = vld [vmem:[#allocation7 + $0xc] sm:$0xf]
    %v151 = vld [vmem:[#allocation7 + $0x10] sm:$0xf]
    %v152 = vld [vmem:[#allocation7 + $0x14] sm:$0xf]
    %v153 = vld [vmem:[#allocation7 + $0x18] sm:$0xf]
    %v154 = vld [vmem:[#allocation7 + $0x1c] sm:$0xf]
    %v155 = vld [vmem:[#allocation7 + $0x20] sm:$0xf]
    %v156 = vld [vmem:[#allocation7 + $0x24] sm:$0xf]
    %v157 = vld [vmem:[#allocation7 + $0x28] sm:$0xf]
    %v158 = vld [vmem:[#allocation7 + $0x2c] sm:$0xf]
    %v159 = vld [vmem:[#allocation7 + $0x30] sm:$0xf]
    %v160 = vld [vmem:[#allocation7 + $0x34] sm:$0xf]
    %v161 = vld [vmem:[#allocation7 + $0x38] sm:$0xf]
    %v162 = vld [vmem:[#allocation7 + $0x3c] sm:$0xf]
    %v163 = vld [vmem:[#allocation8] sm:$0x1]
    %v165 = vperm.slane %v163, 0
    %v171 = vunpack.c.l.b16 %v143
    %v172 = vunpack.c.l.b16 %v144
    %v173 = vunpack.c.l.b16 %v145
    %v174 = vunpack.c.l.b16 %v146
    %v175 = vpack.c.b16 %v172, %v171
    %v176 = vpack.c.b16 %v174, %v173
    %v195 = vunpack.c.l.b16 %v147
    %v196 = vunpack.c.l.b16 %v148
    %v197 = vunpack.c.l.b16 %v149
    %v198 = vunpack.c.l.b16 %v150
    %v199 = vunpack.c.l.b16 %v151
    %v200 = vunpack.c.l.b16 %v152
    %v201 = vunpack.c.l.b16 %v153
    %v202 = vunpack.c.l.b16 %v154
    %v203 = vunpack.c.l.b16 %v155
    %v204 = vunpack.c.l.b16 %v156
    %v205 = vunpack.c.l.b16 %v157
    %v206 = vunpack.c.l.b16 %v158
    %v207 = vunpack.c.l.b16 %v159
    %v208 = vunpack.c.l.b16 %v160
    %v209 = vunpack.c.l.b16 %v161
    %v210 = vunpack.c.l.b16 %v162
    %v211 = vpack.c.b16 %v196, %v195
    %v212 = vpack.c.b16 %v198, %v197
    %v213 = vpack.c.b16 %v200, %v199
    %v214 = vpack.c.b16 %v202, %v201
    %v215 = vpack.c.b16 %v204, %v203
    %v216 = vpack.c.b16 %v206, %v205
    %v217 = vpack.c.b16 %v208, %v207
    %v218 = vpack.c.b16 %v210, %v209
    %227 = vmatpush.bf16.msra.mxu0 %v218
    %228 = vmatpush.bf16.msra.mxu0 %v217
    %229 = vmatpush.bf16.msra.mxu0 %v216
    %230 = vmatpush.bf16.msra.mxu0 %v215
    %231 = vmatpush.bf16.msra.mxu0 %v214
    %232 = vmatpush.bf16.msra.mxu0 %v213
    %233 = vmatpush.bf16.msra.mxu0 %v212
    %234 = vmatpush.bf16.msra.mxu0 %v211
    %235 = vmatmul.bf16.gmra.mxu0 %v175
    %v236 = vpop.f32.mrf.mxu0
    %v237 = vadd.f32 %v165, %v236
    %v238 = vpop.f32.mrf.mxu0
    %v239 = vadd.f32 %v165, %v238
    %240 = vmatmul.bf16.gmra.mxu0 %v176
    %v241 = vpop.f32.mrf.mxu0
    %v242 = vadd.f32 %v165, %v241
    %v243 = vpop.f32.mrf.mxu0
    %v244 = vadd.f32 %v165, %v243
    %245 = vdwg.mxu0
    %v246 = vpack.c.bf16 %v239, %v237
    %v247 = vpack.c.bf16 %v244, %v242
    %v248 = vld [vmem:[#allocation10] sm:$0xf]
    %v249 = vld [vmem:[#allocation10 + $0x4] sm:$0xf]
    %v250 = vld [vmem:[#allocation10 + $0x8] sm:$0xf]
    %v251 = vld [vmem:[#allocation10 + $0xc] sm:$0xf]
    %v252 = vld [vmem:[#allocation10 + $0x10] sm:$0xf]
    %v253 = vld [vmem:[#allocation10 + $0x14] sm:$0xf]
    %v254 = vld [vmem:[#allocation10 + $0x18] sm:$0xf]
    %v255 = vld [vmem:[#allocation10 + $0x1c] sm:$0xf]
    %v256 = vld [vmem:[#allocation10 + $0x20] sm:$0xf]
    %v257 = vld [vmem:[#allocation10 + $0x24] sm:$0xf]
    %v258 = vld [vmem:[#allocation10 + $0x28] sm:$0xf]
    %v259 = vld [vmem:[#allocation10 + $0x2c] sm:$0xf]
    %v260 = vld [vmem:[#allocation10 + $0x30] sm:$0xf]
    %v261 = vld [vmem:[#allocation10 + $0x34] sm:$0xf]
    %v262 = vld [vmem:[#allocation10 + $0x38] sm:$0xf]
    %v263 = vld [vmem:[#allocation10 + $0x3c] sm:$0xf]
    %v264 = vld [vmem:[%s5] sm:$0x1]
    %v266 = vperm.slane %v264, 0
    %v284 = vunpack.c.l.b16 %v248
    %v285 = vunpack.c.l.b16 %v249
    %v286 = vunpack.c.l.b16 %v250
    %v287 = vunpack.c.l.b16 %v251
    %v288 = vunpack.c.l.b16 %v252
    %v289 = vunpack.c.l.b16 %v253
    %v290 = vunpack.c.l.b16 %v254
    %v291 = vunpack.c.l.b16 %v255
    %v292 = vunpack.c.l.b16 %v256
    %v293 = vunpack.c.l.b16 %v257
    %v294 = vunpack.c.l.b16 %v258
    %v295 = vunpack.c.l.b16 %v259
    %v296 = vunpack.c.l.b16 %v260
    %v297 = vunpack.c.l.b16 %v261
    %v298 = vunpack.c.l.b16 %v262
    %v299 = vunpack.c.l.b16 %v263
    %v300 = vpack.c.b16 %v285, %v284
    %v301 = vpack.c.b16 %v287, %v286
    %v302 = vpack.c.b16 %v289, %v288
    %v303 = vpack.c.b16 %v291, %v290
    %v304 = vpack.c.b16 %v293, %v292
    %v305 = vpack.c.b16 %v295, %v294
    %v306 = vpack.c.b16 %v297, %v296
    %v307 = vpack.c.b16 %v299, %v298
    %316 = vmatpush.bf16.msra.mxu0 %v307
    %317 = vmatpush.bf16.msra.mxu0 %v306
    %318 = vmatpush.bf16.msra.mxu0 %v305
    %319 = vmatpush.bf16.msra.mxu0 %v304
    %320 = vmatpush.bf16.msra.mxu0 %v303
    %321 = vmatpush.bf16.msra.mxu0 %v302
    %322 = vmatpush.bf16.msra.mxu0 %v301
    %323 = vmatpush.bf16.msra.mxu0 %v300
    %324 = vmatmul.bf16.gmra.mxu0 %v246
    %v325 = vpop.f32.mrf.mxu0
    %v326 = vadd.f32 %v266, %v325
    %v327 = vpop.f32.mrf.mxu0
    %v328 = vadd.f32 %v266, %v327
    %329 = vmatmul.bf16.gmra.mxu0 %v247
    %v330 = vpop.f32.mrf.mxu0
    %v331 = vadd.f32 %v266, %v330
    %v332 = vpop.f32.mrf.mxu0
    %v333 = vadd.f32 %v266, %v332
    %334 = vdwg.mxu0
    %v335 = vmax.f32 %v326, 0.0
    %v336 = vmax.f32 %v328, 0.0
    %v337 = vmax.f32 %v331, 0.0
    %v338 = vmax.f32 %v333, 0.0
    %v339 = vpack.c.bf16 %v336, %v335
    %v340 = vpack.c.bf16 %v338, %v337
    %v341 = vld [vmem:[#allocation11] sm:$0xf]
    %v342 = vld [vmem:[#allocation11 + $0x4] sm:$0xf]
    %v343 = vld [vmem:[#allocation11 + $0x8] sm:$0xf]
    %v344 = vld [vmem:[#allocation11 + $0xc] sm:$0xf]
    %v345 = vld [vmem:[#allocation11 + $0x10] sm:$0xf]
    %v346 = vld [vmem:[#allocation11 + $0x14] sm:$0xf]
    %v347 = vld [vmem:[#allocation11 + $0x18] sm:$0xf]
    %v348 = vld [vmem:[#allocation11 + $0x1c] sm:$0xf]
    %v349 = vld [vmem:[#allocation11 + $0x20] sm:$0xf]
    %v350 = vld [vmem:[#allocation11 + $0x24] sm:$0xf]
    %v351 = vld [vmem:[#allocation11 + $0x28] sm:$0xf]
    %v352 = vld [vmem:[#allocation11 + $0x2c] sm:$0xf]
    %v353 = vld [vmem:[#allocation11 + $0x30] sm:$0xf]
    %v354 = vld [vmem:[#allocation11 + $0x34] sm:$0xf]
    %v355 = vld [vmem:[#allocation11 + $0x38] sm:$0xf]
    %v356 = vld [vmem:[#allocation11 + $0x3c] sm:$0xf]
    %v357 = vld [vmem:[%s7] sm:$0x1]
    %v359 = vperm.slane %v357, 0
    %v377 = vunpack.c.l.b16 %v341
    %v378 = vunpack.c.l.b16 %v342
    %v379 = vunpack.c.l.b16 %v343
    %v380 = vunpack.c.l.b16 %v344
    %v381 = vunpack.c.l.b16 %v345
    %v382 = vunpack.c.l.b16 %v346
    %v383 = vunpack.c.l.b16 %v347
    %v384 = vunpack.c.l.b16 %v348
    %v385 = vunpack.c.l.b16 %v349
    %v386 = vunpack.c.l.b16 %v350
    %v387 = vunpack.c.l.b16 %v351
    %v388 = vunpack.c.l.b16 %v352
    %v389 = vunpack.c.l.b16 %v353
    %v390 = vunpack.c.l.b16 %v354
    %v391 = vunpack.c.l.b16 %v355
    %v392 = vunpack.c.l.b16 %v356
    %v393 = vpack.c.b16 %v378, %v377
    %v394 = vpack.c.b16 %v380, %v379
    %v395 = vpack.c.b16 %v382, %v381
    %v396 = vpack.c.b16 %v384, %v383
    %v397 = vpack.c.b16 %v386, %v385
    %v398 = vpack.c.b16 %v388, %v387
    %v399 = vpack.c.b16 %v390, %v389
    %v400 = vpack.c.b16 %v392, %v391
    %409 = vmatpush.bf16.msra.mxu0 %v400
    %410 = vmatpush.bf16.msra.mxu0 %v399
    %411 = vmatpush.bf16.msra.mxu0 %v398
    %412 = vmatpush.bf16.msra.mxu0 %v397
    %413 = vmatpush.bf16.msra.mxu0 %v396
    %414 = vmatpush.bf16.msra.mxu0 %v395
    %415 = vmatpush.bf16.msra.mxu0 %v394
    %416 = vmatpush.bf16.msra.mxu0 %v393
    %417 = vmatmul.bf16.gmra.mxu0 %v339
    %v418 = vpop.f32.mrf.mxu0
    %v419 = vadd.f32 %v359, %v418
    %v420 = vpop.f32.mrf.mxu0
    %v421 = vadd.f32 %v359, %v420
    %422 = vmatmul.bf16.gmra.mxu0 %v340
    %v423 = vpop.f32.mrf.mxu0
    %v424 = vadd.f32 %v359, %v423
    %v425 = vpop.f32.mrf.mxu0
    %v426 = vadd.f32 %v359, %v425
    %427 = vdwg.mxu0
    %v428 = vadd.f32 %v419, %v237
    %v429 = vadd.f32 %v421, %v239
    %v430 = vadd.f32 %v424, %v242
    %v431 = vadd.f32 %v426, %v244
    %v432 = vpack.c.bf16 %v429, %v428
    %v433 = vpack.c.bf16 %v431, %v430
    %s434 = scalar_lea.vmem [#allocation10], 64
    %v435 = vld [vmem:[%s434] sm:$0xf]
    %v436 = vld [vmem:[%s434 + $0x4] sm:$0xf]
    %v437 = vld [vmem:[%s434 + $0x8] sm:$0xf]
    %v438 = vld [vmem:[%s434 + $0xc] sm:$0xf]
    %v439 = vld [vmem:[%s434 + $0x10] sm:$0xf]
    %v440 = vld [vmem:[%s434 + $0x14] sm:$0xf]
    %v441 = vld [vmem:[%s434 + $0x18] sm:$0xf]
    %v442 = vld [vmem:[%s434 + $0x1c] sm:$0xf]
    %v443 = vld [vmem:[%s434 + $0x20] sm:$0xf]
    %v444 = vld [vmem:[%s434 + $0x24] sm:$0xf]
    %v445 = vld [vmem:[%s434 + $0x28] sm:$0xf]
    %v446 = vld [vmem:[%s434 + $0x2c] sm:$0xf]
    %v447 = vld [vmem:[%s434 + $0x30] sm:$0xf]
    %v448 = vld [vmem:[%s434 + $0x34] sm:$0xf]
    %v449 = vld [vmem:[%s434 + $0x38] sm:$0xf]
    %v450 = vld [vmem:[%s434 + $0x3c] sm:$0xf]
    %s451 = scalar_lea.vmem %s5, 1
    %v452 = vld [vmem:[%s451] sm:$0x1]
    %v454 = vperm.slane %v452, 0
    %v472 = vunpack.c.l.b16 %v435
    %v473 = vunpack.c.l.b16 %v436
    %v474 = vunpack.c.l.b16 %v437
    %v475 = vunpack.c.l.b16 %v438
    %v476 = vunpack.c.l.b16 %v439
    %v477 = vunpack.c.l.b16 %v440
    %v478 = vunpack.c.l.b16 %v441
    %v479 = vunpack.c.l.b16 %v442
    %v480 = vunpack.c.l.b16 %v443
    %v481 = vunpack.c.l.b16 %v444
    %v482 = vunpack.c.l.b16 %v445
    %v483 = vunpack.c.l.b16 %v446
    %v484 = vunpack.c.l.b16 %v447
    %v485 = vunpack.c.l.b16 %v448
    %v486 = vunpack.c.l.b16 %v449
    %v487 = vunpack.c.l.b16 %v450
    %v488 = vpack.c.b16 %v473, %v472
    %v489 = vpack.c.b16 %v475, %v474
    %v490 = vpack.c.b16 %v477, %v476
    %v491 = vpack.c.b16 %v479, %v478
    %v492 = vpack.c.b16 %v481, %v480
    %v493 = vpack.c.b16 %v483, %v482
    %v494 = vpack.c.b16 %v485, %v484
    %v495 = vpack.c.b16 %v487, %v486
    %504 = vmatpush.bf16.msra.mxu0 %v495
    %505 = vmatpush.bf16.msra.mxu0 %v494
    %506 = vmatpush.bf16.msra.mxu0 %v493
    %507 = vmatpush.bf16.msra.mxu0 %v492
    %508 = vmatpush.bf16.msra.mxu0 %v491
    %509 = vmatpush.bf16.msra.mxu0 %v490
    %510 = vmatpush.bf16.msra.mxu0 %v489
    %511 = vmatpush.bf16.msra.mxu0 %v488
    %512 = vmatmul.bf16.gmra.mxu0 %v432
    %v513 = vpop.f32.mrf.mxu0
    %v514 = vadd.f32 %v454, %v513
    %v515 = vpop.f32.mrf.mxu0
    %v516 = vadd.f32 %v454, %v515
    %517 = vmatmul.bf16.gmra.mxu0 %v433
    %v518 = vpop.f32.mrf.mxu0
    %v519 = vadd.f32 %v454, %v518
    %v520 = vpop.f32.mrf.mxu0
    %v521 = vadd.f32 %v454, %v520
    %522 = vdwg.mxu0
    %v523 = vmax.f32 %v514, 0.0
    %v524 = vmax.f32 %v516, 0.0
    %v525 = vmax.f32 %v519, 0.0
    %v526 = vmax.f32 %v521, 0.0
    %v527 = vpack.c.bf16 %v524, %v523
    %v528 = vpack.c.bf16 %v526, %v525
    %s529 = scalar_lea.vmem [#allocation11], 64
    %v530 = vld [vmem:[%s529] sm:$0xf]
    %v531 = vld [vmem:[%s529 + $0x4] sm:$0xf]
    %v532 = vld [vmem:[%s529 + $0x8] sm:$0xf]
    %v533 = vld [vmem:[%s529 + $0xc] sm:$0xf]
    %v534 = vld [vmem:[%s529 + $0x10] sm:$0xf]
    %v535 = vld [vmem:[%s529 + $0x14] sm:$0xf]
    %v536 = vld [vmem:[%s529 + $0x18] sm:$0xf]
    %v537 = vld [vmem:[%s529 + $0x1c] sm:$0xf]
    %v538 = vld [vmem:[%s529 + $0x20] sm:$0xf]
    %v539 = vld [vmem:[%s529 + $0x24] sm:$0xf]
    %v540 = vld [vmem:[%s529 + $0x28] sm:$0xf]
    %v541 = vld [vmem:[%s529 + $0x2c] sm:$0xf]
    %v542 = vld [vmem:[%s529 + $0x30] sm:$0xf]
    %v543 = vld [vmem:[%s529 + $0x34] sm:$0xf]
    %v544 = vld [vmem:[%s529 + $0x38] sm:$0xf]
    %v545 = vld [vmem:[%s529 + $0x3c] sm:$0xf]
    %s546 = scalar_lea.vmem %s7, 1
    %v547 = vld [vmem:[%s546] sm:$0x1]
    %v549 = vperm.slane %v547, 0
    %v567 = vunpack.c.l.b16 %v530
    %v568 = vunpack.c.l.b16 %v531
    %v569 = vunpack.c.l.b16 %v532
    %v570 = vunpack.c.l.b16 %v533
    %v571 = vunpack.c.l.b16 %v534
    %v572 = vunpack.c.l.b16 %v535
    %v573 = vunpack.c.l.b16 %v536
    %v574 = vunpack.c.l.b16 %v537
    %v575 = vunpack.c.l.b16 %v538
    %v576 = vunpack.c.l.b16 %v539
    %v577 = vunpack.c.l.b16 %v540
    %v578 = vunpack.c.l.b16 %v541
    %v579 = vunpack.c.l.b16 %v542
    %v580 = vunpack.c.l.b16 %v543
    %v581 = vunpack.c.l.b16 %v544
    %v582 = vunpack.c.l.b16 %v545
    %v583 = vpack.c.b16 %v568, %v567
    %v584 = vpack.c.b16 %v570, %v569
    %v585 = vpack.c.b16 %v572, %v571
    %v586 = vpack.c.b16 %v574, %v573
    %v587 = vpack.c.b16 %v576, %v575
    %v588 = vpack.c.b16 %v578, %v577
    %v589 = vpack.c.b16 %v580, %v579
    %v590 = vpack.c.b16 %v582, %v581
    %599 = vmatpush.bf16.msra.mxu0 %v590
    %600 = vmatpush.bf16.msra.mxu0 %v589
    %601 = vmatpush.bf16.msra.mxu0 %v588
    %602 = vmatpush.bf16.msra.mxu0 %v587
    %603 = vmatpush.bf16.msra.mxu0 %v586
    %604 = vmatpush.bf16.msra.mxu0 %v585
    %605 = vmatpush.bf16.msra.mxu0 %v584
    %606 = vmatpush.bf16.msra.mxu0 %v583
    %607 = vmatmul.bf16.gmra.mxu0 %v527
    %v608 = vpop.f32.mrf.mxu0
    %v609 = vadd.f32 %v549, %v608
    %v610 = vpop.f32.mrf.mxu0
    %v611 = vadd.f32 %v549, %v610
    %612 = vmatmul.bf16.gmra.mxu0 %v528
    %v613 = vpop.f32.mrf.mxu0
    %v614 = vadd.f32 %v549, %v613
    %v615 = vpop.f32.mrf.mxu0
    %v616 = vadd.f32 %v549, %v615
    %617 = vdwg.mxu0
    %v618 = vadd.f32 %v609, %v428
    %v619 = vadd.f32 %v611, %v429
    %v620 = vadd.f32 %v614, %v430
    %v621 = vadd.f32 %v616, %v431
    %v622 = vmax.f32 %v618, 0.0
    %v623 = vmax.f32 %v619, 0.0
    %v624 = vmax.f32 %v620, 0.0
    %v625 = vmax.f32 %v621, 0.0
    %v626 = vand.u32 2147483647, %v618
    %v627 = vand.u32 2147483647, %v619
    %v628 = vand.u32 2147483647, %v620
    %v629 = vand.u32 2147483647, %v621
    %v630 = vsub.f32 0.0, %v626
    %v631 = vsub.f32 0.0, %v627
    %v632 = vsub.f32 0.0, %v628
    %v633 = vsub.f32 0.0, %v629
    %v634 = vmul.f32 %v630, 1.442695
    %v635 = vpow.pop %v634
    %v636 = vmul.f32 %v631, 1.442695
    %v637 = vpow.pop %v636
    %v638 = vmul.f32 %v632, 1.442695
    %v639 = vpow.pop %v638
    %v640 = vmul.f32 %v633, 1.442695
    %v641 = vpow.pop %v640
    %v642 = vadd.f32 %v635, 1.0
    %v643 = vlog2.pop %v642
    %v644 = vmul.f32 %v643, 0.6931472
    %v645 = vmul.f32 -0.5, %v635
    %v646 = vadd.f32 %v645, 1.0
    %v647 = vmul.f32 %v646, %v635
    %v648 = vand.u32 2147483647, %v635
    %vm649 = vcmp.lt.f32.partialorder %v648, 0.0004427343
    %v650 = vsel %vm649, %v647, %v644
    %v651 = vadd.f32 %v637, 1.0
    %v652 = vlog2.pop %v651
    %v653 = vmul.f32 %v652, 0.6931472
    %v654 = vmul.f32 -0.5, %v637
    %v655 = vadd.f32 %v654, 1.0
    %v656 = vmul.f32 %v655, %v637
    %v657 = vand.u32 2147483647, %v637
    %vm658 = vcmp.lt.f32.partialorder %v657, 0.0004427343
    %v659 = vsel %vm658, %v656, %v653
    %v660 = vadd.f32 %v639, 1.0
    %v661 = vlog2.pop %v660
    %v662 = vmul.f32 %v661, 0.6931472
    %v663 = vmul.f32 -0.5, %v639
    %v664 = vadd.f32 %v663, 1.0
    %v665 = vmul.f32 %v664, %v639
    %v666 = vand.u32 2147483647, %v639
    %vm667 = vcmp.lt.f32.partialorder %v666, 0.0004427343
    %v668 = vsel %vm667, %v665, %v662
    %v669 = vadd.f32 %v641, 1.0
    %v670 = vlog2.pop %v669
    %v671 = vmul.f32 %v670, 0.6931472
    %v672 = vmul.f32 -0.5, %v641
    %v673 = vadd.f32 %v672, 1.0
    %v674 = vmul.f32 %v673, %v641
    %v675 = vand.u32 2147483647, %v641
    %vm676 = vcmp.lt.f32.partialorder %v675, 0.0004427343
    %v677 = vsel %vm676, %v674, %v671
    %v678 = vadd.f32 %v622, %v650
    %v679 = vadd.f32 %v623, %v659
    %v680 = vadd.f32 %v624, %v668
    %v681 = vadd.f32 %v625, %v677
    %v682 = vlaneseq
    %v683 = vand.u32 %v682, 127
    %vm684 = vcmp.lt.s32.totalorder %v683, 64
    %v685 = vsel %vm684, 1, 0
    %vm686 = vcmp.eq.s32.totalorder %v685, 1
    %v687 = vsel %vm686, %v618, %v678
    %v688 = vsel %vm686, %v619, %v679
    %v689 = vsel %vm686, %v620, %v680
    %v690 = vsel %vm686, %v621, %v681
    %v691 = vpack.c.bf16 %v687, %v687
    %v692 = vpack.c.bf16 %v688, %v688
    %v693 = vpack.c.bf16 %v689, %v689
    %v694 = vpack.c.bf16 %v690, %v690
    %695 = vst [vmem:[#allocation14] sm:$0xf] %v691
    %696 = vst [vmem:[#allocation14 + $0x8] sm:$0xf] %v692
    %697 = vst [vmem:[#allocation14 + $0x10] sm:$0xf] %v693
    %698 = vst [vmem:[#allocation14 + $0x18] sm:$0xf] %v694
    %699 = vrot.lane.b32.xlu0 %v678, 64
    %v700 = vpop.permute.xlu0 %699
    %701 = vrot.lane.b32.xlu0 %v679, 64
    %v702 = vpop.permute.xlu0 %701
    %703 = vrot.lane.b32.xlu0 %v680, 64
    %v704 = vpop.permute.xlu0 %703
    %705 = vrot.lane.b32.xlu0 %v681, 64
    %v706 = vpop.permute.xlu0 %705
    %v707 = vld [vmem:[#allocation5] sm:$0xf]
    %v708 = vld [vmem:[#allocation5 + $0x4] sm:$0xf]
    %v709 = vld [vmem:[#allocation5 + $0x8] sm:$0xf]
    %v710 = vld [vmem:[#allocation5 + $0xc] sm:$0xf]
    %v711 = vunpack.c.l.bf16 %v707
    %v712 = vunpack.c.l.bf16 %v708
    %v713 = vunpack.c.l.bf16 %v709
    %v714 = vunpack.c.l.bf16 %v710
    %v715 = vmul.f32 %v711, %v700
    %v716 = vmul.f32 %v712, %v702
    %v717 = vmul.f32 %v713, %v704
    %v718 = vmul.f32 %v714, %v706
    %v719 = vadd.f32 %v618, %v715
    %v720 = vadd.f32 %v619, %v716
    %v721 = vadd.f32 %v620, %v717
    %v722 = vadd.f32 %v621, %v718
    %v723 = vpack.c.bf16 %v720, %v719
    %v724 = vpack.c.bf16 %v722, %v721
    %v725 = vld [vmem:[#allocation13] sm:$0xf]
    %v726 = vld [vmem:[#allocation13 + $0x4] sm:$0xf]
    %v727 = vld [vmem:[#allocation13 + $0x8] sm:$0xf]
    %v728 = vld [vmem:[#allocation13 + $0xc] sm:$0xf]
    %v729 = vld [vmem:[#allocation13 + $0x10] sm:$0xf]
    %v730 = vld [vmem:[#allocation13 + $0x14] sm:$0xf]
    %v731 = vld [vmem:[#allocation13 + $0x18] sm:$0xf]
    %v732 = vld [vmem:[#allocation13 + $0x1c] sm:$0xf]
    %v733 = vld [vmem:[#allocation13 + $0x20] sm:$0xf]
    %v734 = vld [vmem:[#allocation13 + $0x24] sm:$0xf]
    %v735 = vld [vmem:[#allocation13 + $0x28] sm:$0xf]
    %v736 = vld [vmem:[#allocation13 + $0x2c] sm:$0xf]
    %v737 = vld [vmem:[#allocation13 + $0x30] sm:$0xf]
    %v738 = vld [vmem:[#allocation13 + $0x34] sm:$0xf]
    %v739 = vld [vmem:[#allocation13 + $0x38] sm:$0xf]
    %v740 = vld [vmem:[#allocation13 + $0x3c] sm:$0xf]
    %v741 = vld [vmem:[%s9] sm:$0x1]
    %v743 = vperm.slane %v741, 0
    %v761 = vunpack.c.l.b16 %v725
    %v762 = vunpack.c.l.b16 %v726
    %v763 = vunpack.c.l.b16 %v727
    %v764 = vunpack.c.l.b16 %v728
    %v765 = vunpack.c.l.b16 %v729
    %v766 = vunpack.c.l.b16 %v730
    %v767 = vunpack.c.l.b16 %v731
    %v768 = vunpack.c.l.b16 %v732
    %v769 = vunpack.c.l.b16 %v733
    %v770 = vunpack.c.l.b16 %v734
    %v771 = vunpack.c.l.b16 %v735
    %v772 = vunpack.c.l.b16 %v736
    %v773 = vunpack.c.l.b16 %v737
    %v774 = vunpack.c.l.b16 %v738
    %v775 = vunpack.c.l.b16 %v739
    %v776 = vunpack.c.l.b16 %v740
    %v777 = vpack.c.b16 %v762, %v761
    %v778 = vpack.c.b16 %v764, %v763
    %v779 = vpack.c.b16 %v766, %v765
    %v780 = vpack.c.b16 %v768, %v767
    %v781 = vpack.c.b16 %v770, %v769
    %v782 = vpack.c.b16 %v772, %v771
    %v783 = vpack.c.b16 %v774, %v773
    %v784 = vpack.c.b16 %v776, %v775
    %793 = vmatpush.bf16.msra.mxu0 %v784
    %794 = vmatpush.bf16.msra.mxu0 %v783
    %795 = vmatpush.bf16.msra.mxu0 %v782
    %796 = vmatpush.bf16.msra.mxu0 %v781
    %797 = vmatpush.bf16.msra.mxu0 %v780
    %798 = vmatpush.bf16.msra.mxu0 %v779
    %799 = vmatpush.bf16.msra.mxu0 %v778
    %800 = vmatpush.bf16.msra.mxu0 %v777
    %801 = vmatmul.bf16.gmra.mxu0 %v723
    %v802 = vpop.f32.mrf.mxu0
    %v803 = vadd.f32 %v743, %v802
    %v804 = vpop.f32.mrf.mxu0
    %v805 = vadd.f32 %v743, %v804
    %806 = vmatmul.bf16.gmra.mxu0 %v724
    %v807 = vpop.f32.mrf.mxu0
    %v808 = vadd.f32 %v743, %v807
    %v809 = vpop.f32.mrf.mxu0
    %v810 = vadd.f32 %v743, %v809
    %811 = vdwg.mxu0
    %v812 = vpack.c.bf16 %v803, %v803
    %v813 = vpack.c.bf16 %v805, %v805
    %v814 = vpack.c.bf16 %v808, %v808
    %v815 = vpack.c.bf16 %v810, %v810
    %816 = vst [vmem:[#allocation14 + $0x4] sm:$0xf] %v812
    %817 = vst [vmem:[#allocation14 + $0xc] sm:$0xf] %v813
    %818 = vst [vmem:[#allocation14 + $0x14] sm:$0xf] %v814
    %819 = vst [vmem:[#allocation14 + $0x1c] sm:$0xf] %v815
    // Predicated region
    $region70: #{tpu_custom_call.1} parent=1 // pred_check
      _
    $region71: #{tpu_custom_call.1} parent=1 // pred_check_branch
      %821 = sbr.rel (0) target = $region73
    $region72: #{tpu_custom_call.1} parent=1 // pred_region
      %823 = vsyncadd [#allocation4], 0
      %s824 = sshll.u32 [#allocation14], 4
      %s825 = int_to_ptr.vmem [resolvable:$true] %s824
      %s826 = sshll.u32 %s10, 4
      %s827 = int_to_ptr.hbm [resolvable:$true] %s826
      %832 = dma.vmem_to_hbm [thread:$0]  %s825, 512, %s827, [#allocation4], 128, 128, 8
    $region73: #{tpu_custom_call.1} parent=1 // pred_fallthru
      _
    // Predicated region
    $region74: #{tpu_custom_call.1} parent=1 // pred_check
      _
    $region75: #{tpu_custom_call.1} parent=1 // pred_check_branch
      %834 = sbr.rel (0) target = $region77
    $region76: #{tpu_custom_call.1} parent=1 // pred_region
      %836 = dma.done [#allocation4], 512
    $region77: #{tpu_custom_call.1} parent=1 // pred_fallthru
      _
    %837 = vsyncpa [#allocation3], 1
    %838 = vsyncpa [#allocation6], 1
    %839 = vsyncpa [#allocation9], 1
    %840 = vsyncpa [#allocation12], 1
    %841 = vsyncpa [#allocation4], 1

</llo_original>
